<compile_context>
chip_gen: v7x
topology: tpu7x:2x2x1
jax: 0.10.0
libtpu: 0.0.40
codegen_flags: <defaults>
</compile_context>

<pallas_src>
import functools
import math

import jax
import jax.numpy as jnp
from jax import lax
from jax.experimental import pallas as pl
from jax.experimental.pallas import tpu as pltpu


def _rmsnorm_kernel(x_ref, w_ref, o_ref, *, eps, inv_d, x_dtype):
    # x_ref: (TM, Dp) input tile, w_ref: (1, Dp) f32 weight, o_ref: (TM, Dp) output.
    x = x_ref[...].astype(jnp.float32)                    # x.float()
    ss = jnp.sum(x * x, axis=-1, keepdims=True)           # padded cols are 0 -> sum over true dim
    normed = x * lax.rsqrt(ss * inv_d + eps)              # fold 1/D into rsqrt arg; rsqrt on EUP
    # Match torch: ._norm(x.float()).type_as(x) * weight  (the double cast is intentional)
    normed = normed.astype(x_dtype).astype(jnp.float32)
    o_ref[...] = (normed * w_ref[...]).astype(o_ref.dtype)


def _vmem_capacity_bytes():
    try:
        info = pltpu.get_tpu_info()
        return int(info.vmem_capacity_bytes)
    except Exception:
        return 64 * 1024 * 1024  # conservative fallback (v7x per-TC VMEM)


def _pick_tm(rows, dim_p, in_bytes, out_bytes, sublane, vmem_cap):
    # Budget ~half of physical VMEM for the tile working set (headroom for the
    # pipeline's bookkeeping and the weight buffer).
    budget = int(vmem_cap * 0.5)
    # Per-row footprint: double-buffered input + output, plus ~2 f32 temps (x, x*x).
    per_row = dim_p * (2 * in_bytes + 2 * out_bytes + 2 * 4)
    tm = max(sublane, (budget // per_row) // sublane * sublane)
    tm = min(tm, 1024)  # HBM-roofline plateau is reached around TM ~ 512-1024
    rows_padded = int(pl.cdiv(rows, sublane)) * sublane
    tm = min(tm, rows_padded)
    # Keep >= 2 grid steps when rows allow it, so v7x can shard across its 2 TCs.
    while pl.cdiv(rows, tm) < 2 and tm > sublane and rows > 2 * sublane:
        tm = max(sublane, (tm // 2) // sublane * sublane)
    return tm


def rmsnorm(x, weight, eps: float = 1e-5, tm=None):
    """RMSNorm over the last axis of x, with per-feature weight of shape (dim,)."""
    orig_shape = x.shape
    dim = int(orig_shape[-1])
    rows = int(math.prod(orig_shape[:-1])) if len(orig_shape) > 1 else 1

    # Output dtype follows torch promotion of (x.dtype, weight.dtype).
    out_dtype = jnp.promote_types(x.dtype, weight.dtype)
    in_bytes = jnp.dtype(x.dtype).itemsize
    out_bytes = jnp.dtype(out_dtype).itemsize
    # Sublane packing: f32 -> 8, bf16 -> 16, int8/fp8 -> 32.
    sublane = 8 * max(1, 4 // in_bytes)

    # Lane-dense feature axis: pad dim to a multiple of 128 (pad values are 0,
    # so the sum over features is unchanged; mean divides by the true dim).
    dim_p = int(pl.cdiv(dim, 128)) * 128

    x2d = x.reshape(rows, dim)
    w2d = weight.astype(jnp.float32).reshape(1, dim)  # hoist the per-step weight cast
    if dim_p != dim:
        x2d = jnp.pad(x2d, ((0, 0), (0, dim_p - dim)))
        w2d = jnp.pad(w2d, ((0, 0), (0, dim_p - dim)))

    vmem_cap = _vmem_capacity_bytes()
    if tm is None:
        tm = _pick_tm(rows, dim_p, in_bytes, out_bytes, sublane, vmem_cap)
    grid = (int(pl.cdiv(rows, tm)),)  # ragged last block handled by Pallas

    kernel = functools.partial(
        _rmsnorm_kernel, eps=float(eps), inv_d=1.0 / dim, x_dtype=x.dtype
    )

    out2d = pl.pallas_call(
        kernel,
        out_shape=jax.ShapeDtypeStruct((rows, dim_p), out_dtype),
        grid_spec=pltpu.PrefetchScalarGridSpec(
            num_scalar_prefetch=0,
            grid=grid,
            in_specs=[
                pl.BlockSpec((tm, dim_p), lambda i: (i, 0)),   # input row-tile
                pl.BlockSpec((1, dim_p), lambda i: (0, 0)),    # weight, resident every step
            ],
            out_specs=pl.BlockSpec((tm, dim_p), lambda i: (i, 0)),
        ),
        compiler_params=pltpu.CompilerParams(
            dimension_semantics=("parallel",),
            vmem_limit_bytes=int(vmem_cap * 0.85),
        ),
    )(x2d, w2d)

    if dim_p != dim:
        out2d = out2d[:, :dim]
    return out2d.reshape(orig_shape)


def rmsnorm_ref(x, weight, eps: float = 1e-5):
    xf = x.astype(jnp.float32)
    normed = xf * lax.rsqrt(jnp.mean(xf * xf, axis=-1, keepdims=True) + eps)
    return normed.astype(x.dtype) * weight


if __name__ == "__main__":
    key = jax.random.PRNGKey(0)
    batch, seq, hidden = 2, 8, 32

    x = jax.random.normal(key, (batch, seq, hidden), dtype=jnp.float32)
    # nn.Parameter(torch.ones(dim)) -> deterministic ones
    weight = jnp.ones((hidden,), dtype=jnp.float32)

    out = rmsnorm(x, weight, eps=1e-5)
    out = jax.block_until_ready(out)

    ref = rmsnorm_ref(x, weight, eps=1e-5)
    assert out.shape == x.shape, (out.shape, x.shape)
    assert out.dtype == ref.dtype, (out.dtype, ref.dtype)
    assert jnp.allclose(out, ref, atol=1e-5, rtol=1e-5), "mismatch vs reference"

    print("KERNEL_OK")
</pallas_src>

<mosaic_0001>
module attributes {stable_mosaic.version = 11 : i64} {
  func.func @_rmsnorm_kernel(%arg0: i32, %arg1: memref<16x128xf32, #tpu.memory_space<vmem>>, %arg2: memref<1x128xf32, #tpu.memory_space<vmem>>, %arg3: memref<16x128xf32, #tpu.memory_space<vmem>>) attributes {dimension_semantics = [#tpu.dimension_semantics<parallel>], iteration_bounds = array<i64: 1>, scalar_prefetch = 0 : i64, scratch_operands = 0 : i64, tpu.core_type = #tpu.core_type<tc>, window_params = [{transform_indices = @transform_0, window_bounds = array<i64: 16, 128>}, {pipeline_mode = #tpu.pipeline_mode<synchronous>, transform_indices = @transform_1, window_bounds = array<i64: 1, 128>}, {transform_indices = @transform_2, window_bounds = array<i64: 16, 128>}]} {
    %c0 = arith.constant 0 : index
    %c0_0 = arith.constant 0 : index
    %0 = vector.load %arg1[%c0, %c0_0] : memref<16x128xf32, #tpu.memory_space<vmem>>, vector<16x128xf32>
    %1 = arith.mulf %0, %0 : vector<16x128xf32>
    %cst = arith.constant dense<0.000000e+00> : vector<16xf32>
    %2 = vector.multi_reduction <add>, %1, %cst [1] : vector<16x128xf32> to vector<16xf32>
    %3 = vector.shape_cast %2 : vector<16xf32> to vector<16x1xf32>
    %cst_1 = arith.constant 3.125000e-02 : f32
    %4 = vector.broadcast %cst_1 : f32 to vector<16x1xf32>
    %5 = arith.mulf %3, %4 : vector<16x1xf32>
    %cst_2 = arith.constant 9.99999974E-6 : f32
    %6 = vector.broadcast %cst_2 : f32 to vector<16x1xf32>
    %7 = arith.addf %5, %6 : vector<16x1xf32>
    %8 = math.rsqrt %7 : vector<16x1xf32>
    %9 = vector.broadcast %8 : vector<16x1xf32> to vector<16x128xf32>
    %10 = arith.mulf %0, %9 : vector<16x128xf32>
    %c0_3 = arith.constant 0 : index
    %c0_4 = arith.constant 0 : index
    %11 = vector.load %arg2[%c0_3, %c0_4] : memref<1x128xf32, #tpu.memory_space<vmem>>, vector<1x128xf32>
    %12 = vector.broadcast %11 : vector<1x128xf32> to vector<16x128xf32>
    %13 = arith.mulf %10, %12 : vector<16x128xf32>
    %c0_5 = arith.constant 0 : index
    %c0_6 = arith.constant 0 : index
    %14 = vector.load %arg3[%c0_5, %c0_6] : memref<16x128xf32, #tpu.memory_space<vmem>>, vector<16x128xf32>
    tpu.vector_store %arg3[%c0_5, %c0_6], %13 {strides = array<i32>} : memref<16x128xf32, #tpu.memory_space<vmem>>, vector<16x128xf32>,
    return
  }
  func.func @transform_0(%arg0: i32) -> (i32, i32) {
    %c0_i32 = arith.constant 0 : i32
    %c0_i32_0 = arith.constant 0 : i32
    return %arg0, %c0_i32 : i32, i32
  }
  func.func @transform_1(%arg0: i32) -> (i32, i32) {
    %c0_i32 = arith.constant 0 : i32
    %c0_i32_0 = arith.constant 0 : i32
    %c0_i32_1 = arith.constant 0 : i32
    return %c0_i32, %c0_i32_0 : i32, i32
  }
  func.func @transform_2(%arg0: i32) -> (i32, i32) {
    %c0_i32 = arith.constant 0 : i32
    %c0_i32_0 = arith.constant 0 : i32
    return %arg0, %c0_i32 : i32, i32
  }
}

</mosaic_0001>

<llo_original>
// kernel: tpu_custom_call.1
$region0: #{tpu_custom_call.1}
  #allocation0 [shape = 'u32[]', space=smem, size = 0x4, offset = 0x4, fixed_abs, tag = 'smem constant byte address 0x4 - core index']
  #allocation1 [shape = 'u32[144,128]{1,0:T(1,128)}', space=vmem, size = 0x12000, scoped, tag = 'internal scratch']
  %s0 = inlined_call_operand.hbm [shape: f32[16,128], index: 0, kind: input, shape index: {}]
  %s1 = inlined_call_operand.vmem [shape: f32[1,128], index: 1, kind: input, shape index: {}]
  %s2 = inlined_call_operand.hbm [shape: f32[16,128], index: 2, kind: output, shape index: {}]
  %s3 = sld [smem:[#allocation0]]
  $region22: #{tpu_custom_call.1} parent=0
    _
  %s5 = ssub.s32 1, %s3
  %s6 = scalar_select 0, %s5, %s3
  $region1: #{tpu_custom_call.1} parent=0
    #allocation2 [shape = 'u8[8192]{0}', space=vmem, size = 0x2000, scoped, tag = 'input window, operand 0, single buffered']
    #allocation3 [shape = 's32[1]{0}', space=sflag, size = 0x4, scoped, tag = 'scoped memory for tpu_custom_call.1']
    #allocation4 [shape = 's32[1]{0}', space=sflag, size = 0x4, scoped, tag = 'scoped memory for tpu_custom_call.1']
    #allocation5 [shape = 'u8[8192]{0}', space=vmem, size = 0x2000, scoped, tag = 'output window, operand 0, single buffered']
    %7 = vsyncpa [#allocation3], 0
    %8 = vsyncpa [#allocation4], 0
    // Predicated region
    $region2: #{tpu_custom_call.1} parent=1 // pred_check
      _
    $region3: #{tpu_custom_call.1} parent=1 // pred_check_branch
      %10 = sbr.rel (0) target = $region5
    $region4: #{tpu_custom_call.1} parent=1 // pred_region
      %s12 = ssub.s32 256, 256
      %13 = vsyncadd [#allocation3], %s12
      %s14 = sshll.u32 [#allocation2], 4
      %s15 = int_to_ptr.vmem [resolvable:$true] %s14
      %20 = dma.hbm_to_vmem [thread:$0]  %s0, 256, %s15, [#allocation3], 128, 128, 8
    $region5: #{tpu_custom_call.1} parent=1 // pred_fallthru
      _
    // Predicated region
    $region6: #{tpu_custom_call.1} parent=1 // pred_check
      _
    $region7: #{tpu_custom_call.1} parent=1 // pred_check_branch
      %22 = sbr.rel (0) target = $region9
    $region8: #{tpu_custom_call.1} parent=1 // pred_region
      _
    $region9: #{tpu_custom_call.1} parent=1 // pred_fallthru
      _
    // Predicated region
    $region10: #{tpu_custom_call.1} parent=1 // pred_check
      _
    $region11: #{tpu_custom_call.1} parent=1 // pred_check_branch
      %24 = sbr.rel (0) target = $region13
    $region12: #{tpu_custom_call.1} parent=1 // pred_region
      %25 = dma.done [#allocation3], 256
    $region13: #{tpu_custom_call.1} parent=1 // pred_fallthru
      _
    %v26 = vld [vmem:[#allocation2] sm:$0xff]
    %v27 = vld [vmem:[#allocation2 + $0x8] sm:$0xff]
    %v28 = vmul.f32 %v26, %v26
    %v29 = vmul.f32 %v27, %v27
    %30 = vadd.xlane.f32.xlu0 %v28
    %v31 = vpop.xlane.xlu0 %30
    %32 = vadd.xlane.f32.xlu0 %v29
    %v33 = vpop.xlane.xlu0 %32
    %v34 = vmul.f32 %v31, 0.03125
    %v35 = vmul.f32 %v33, 0.03125
    %v36 = vadd.f32 %v34, 1e-05
    %v37 = vadd.f32 %v35, 1e-05
    %v38 = vrsqrt.pop %v36
    %v39 = vrsqrt.pop %v37
    %v40 = vmul.f32 %v26, %v38
    %v41 = vmul.f32 %v27, %v39
    %v42 = vld [vmem:[%s1] sm:$0x1]
    %v44 = vlaneseq
    %v45 = vshrl.u32 %v44, 7
    %v46 = vsub.s32 0, %v45
    %v47 = vrot.slane %v42, %v46
    %v49 = vmul.f32 %v40, %v47
    %v50 = vmul.f32 %v41, %v47
    %51 = vst [vmem:[#allocation5] sm:$0xff] %v49
    %52 = vst [vmem:[#allocation5 + $0x8] sm:$0xff] %v50
    // Predicated region
    $region14: #{tpu_custom_call.1} parent=1 // pred_check
      _
    $region15: #{tpu_custom_call.1} parent=1 // pred_check_branch
      %54 = sbr.rel (0) target = $region17
    $region16: #{tpu_custom_call.1} parent=1 // pred_region
      %s56 = ssub.s32 256, 256
      %57 = vsyncadd [#allocation4], %s56
      %s58 = sshll.u32 [#allocation5], 4
      %s59 = int_to_ptr.vmem [resolvable:$true] %s58
      %64 = dma.vmem_to_hbm [thread:$0]  %s59, 256, %s2, [#allocation4], 128, 128, 8
    $region17: #{tpu_custom_call.1} parent=1 // pred_fallthru
      _
    // Predicated region
    $region18: #{tpu_custom_call.1} parent=1 // pred_check
      _
    $region19: #{tpu_custom_call.1} parent=1 // pred_check_branch
      %66 = sbr.rel (0) target = $region21
    $region20: #{tpu_custom_call.1} parent=1 // pred_region
      %67 = dma.done [#allocation4], 256
    $region21: #{tpu_custom_call.1} parent=1 // pred_fallthru
      _
    %68 = vsyncpa [#allocation3], 1
    %69 = vsyncpa [#allocation4], 1

</llo_original>
